<compile_context>
chip_gen: v7x
topology: tpu7x:2x2x1
jax: 0.10.0
libtpu: 0.0.40
codegen_flags: <defaults>
</compile_context>

<pallas_src>
import jax
import jax.numpy as jnp
from jax.experimental import pallas as pl
from jax.experimental.pallas import tpu as pltpu


def _round_up(n, m):
    return ((n + m - 1) // m) * m


def _pick_tile(B):
    """Pick the batch-tile size from the chip's VMEM capacity."""
    try:
        info = pltpu.get_tpu_info()
        vmem_bytes = getattr(info, "vmem_capacity_bytes", 64 << 20)
    except Exception:
        vmem_bytes = 64 << 20  # conservative (v7x-sized VMEM)
    # 128 MiB VMEM (v5e/v6e): 4096-row tiles; 64 MiB VMEM (v7x): 2048-row tiles.
    tb_max = 4096 if vmem_bytes >= (96 << 20) else 2048
    return min(tb_max, _round_up(B, 8))


def _student_mlp_kernel(x_ref, w1_ref, b1_ref, w2_ref, b2_ref, w3_ref, b3_ref, o_ref):
    """Fused 3-layer MLP on one (TB, 784) batch tile.

    x arrives as f32 straight from HBM; the bf16 cast for the MXU happens here
    (hidden under the tile DMA). f32 accumulation, f32 bias-add / ReLU.
    Weights/biases are VMEM-resident across grid steps.
    """
    x = x_ref[...].astype(jnp.bfloat16)                                  # (TB, 784) bf16
    h1 = jnp.dot(x, w1_ref[...], preferred_element_type=jnp.float32)     # (TB, 20) f32
    h1 = jnp.maximum(h1 + b1_ref[...], 0.0)                              # ReLU (f32)
    h2 = jnp.dot(h1.astype(jnp.bfloat16), w2_ref[...],
                 preferred_element_type=jnp.float32)                     # (TB, 20) f32
    h2 = jnp.maximum(h2 + b2_ref[...], 0.0)                              # ReLU (f32)
    h3 = jnp.dot(h2.astype(jnp.bfloat16), w3_ref[...],
                 preferred_element_type=jnp.float32)                     # (TB, 10) f32
    o_ref[...] = (h3 + b3_ref[...]).astype(o_ref.dtype)


def student_model_forward(x, params):
    """Forward pass of Student_model.

    x: (B, 1, 28, 28) float32 (NCHW, like PyTorch) or already-flat (B, 784).
    params: dict with w1 (784,20), b1 (20,), w2 (20,20), b2 (20,), w3 (20,10), b3 (10,)
            (weights stored as (in, out), i.e. transposed vs. PyTorch).
    Returns logits of shape (B, 10) in float32.
    """
    x = jnp.reshape(x, (-1, 784))                       # x.view(-1, 784)
    if x.dtype != jnp.float32:
        x = x.astype(jnp.float32)
    B = x.shape[0]

    TB = _pick_tile(B)
    grid = (pl.cdiv(B, TB),)                            # ragged last block is clipped

    # Weights cast once to bf16 (tiny, one-time); f32 biases.
    w1 = params["w1"].astype(jnp.bfloat16)
    w2 = params["w2"].astype(jnp.bfloat16)
    w3 = params["w3"].astype(jnp.bfloat16)
    b1 = params["b1"].reshape(1, -1).astype(jnp.float32)
    b2 = params["b2"].reshape(1, -1).astype(jnp.float32)
    b3 = params["b3"].reshape(1, -1).astype(jnp.float32)

    cost = pl.CostEstimate(
        flops=2 * B * (784 * 20 + 20 * 20 + 20 * 10),
        transcendentals=0,
        bytes_accessed=B * (784 * 4 + 10 * 4)
        + 2 * (784 * 20 + 20 * 20 + 20 * 10)
        + 4 * (20 + 20 + 10),
    )

    out = pl.pallas_call(
        _student_mlp_kernel,
        out_shape=jax.ShapeDtypeStruct((B, 10), jnp.float32),
        grid=grid,
        in_specs=[
            # x: streamed per batch tile in f32 (pipeline double-buffers this DMA).
            pl.BlockSpec((TB, 784), lambda i: (i, 0)),
            # Weights / biases: full-array blocks, constant index -> VMEM-resident.
            pl.BlockSpec((784, 20), lambda i: (0, 0)),
            pl.BlockSpec((1, 20), lambda i: (0, 0)),
            pl.BlockSpec((20, 20), lambda i: (0, 0)),
            pl.BlockSpec((1, 20), lambda i: (0, 0)),
            pl.BlockSpec((20, 10), lambda i: (0, 0)),
            pl.BlockSpec((1, 10), lambda i: (0, 0)),
        ],
        out_specs=pl.BlockSpec((TB, 10), lambda i: (i, 0)),
        compiler_params=pltpu.CompilerParams(
            dimension_semantics=("parallel",),           # shard batch tiles across TCs
            vmem_limit_bytes=(64 << 20) if TB >= 4096 else (32 << 20),
        ),
        cost_estimate=cost,
    )(x, w1, b1, w2, b2, w3, b3)

    return out


def init_student_params(key):
    """Deterministic init matching nn.Linear default (U(-1/sqrt(fan_in), 1/sqrt(fan_in)))."""
    def linear(k, fan_in, fan_out):
        kw, kb = jax.random.split(k)
        bound = 1.0 / jnp.sqrt(jnp.float32(fan_in))
        # Stored as (in, out) so the kernel can do x @ W directly.
        w = jax.random.uniform(kw, (fan_in, fan_out), jnp.float32, -bound, bound)
        b = jax.random.uniform(kb, (fan_out,), jnp.float32, -bound, bound)
        return w, b

    k1, k2, k3 = jax.random.split(key, 3)
    w1, b1 = linear(k1, 784, 20)
    w2, b2 = linear(k2, 20, 20)
    w3, b3 = linear(k3, 20, 10)
    return {"w1": w1, "b1": b1, "w2": w2, "b2": b2, "w3": w3, "b3": b3}


if __name__ == "__main__":
    key = jax.random.PRNGKey(0)
    k_params, k_x = jax.random.split(key)

    params = init_student_params(k_params)

    # Small MNIST-like batch: (B=4, C=1, H=28, W=28), NCHW like PyTorch.
    x = jax.random.normal(k_x, (4, 1, 28, 28), dtype=jnp.float32)

    logits = student_model_forward(x, params)
    jax.block_until_ready(logits)

    # Sanity check against pure-JAX f32 reference (bf16 MXU operands -> loose tol).
    xf = x.reshape(-1, 784)
    ref = jnp.maximum(xf @ params["w1"] + params["b1"], 0.0)
    ref = jnp.maximum(ref @ params["w2"] + params["b2"], 0.0)
    ref = ref @ params["w3"] + params["b3"]
    assert logits.shape == (4, 10)
    assert jnp.allclose(logits, ref, atol=3e-2, rtol=3e-2), (
        f"max abs err {jnp.max(jnp.abs(logits - ref))}"
    )

    print("KERNEL_OK")
</pallas_src>

<mosaic_0001>
module attributes {stable_mosaic.version = 11 : i64} {
  func.func @_student_mlp_kernel(%arg0: i32, %arg1: memref<8x784xf32, #tpu.memory_space<vmem>>, %arg2: memref<784x20xbf16, #tpu.memory_space<vmem>>, %arg3: memref<1x20xf32, #tpu.memory_space<vmem>>, %arg4: memref<20x20xbf16, #tpu.memory_space<vmem>>, %arg5: memref<1x20xf32, #tpu.memory_space<vmem>>, %arg6: memref<20x10xbf16, #tpu.memory_space<vmem>>, %arg7: memref<1x10xf32, #tpu.memory_space<vmem>>, %arg8: memref<8x10xf32, #tpu.memory_space<vmem>>) attributes {dimension_semantics = [#tpu.dimension_semantics<parallel>], iteration_bounds = array<i64: 1>, scalar_prefetch = 0 : i64, scratch_operands = 0 : i64, tpu.core_type = #tpu.core_type<tc>, window_params = [{transform_indices = @transform_0, window_bounds = array<i64: 8, 784>}, {pipeline_mode = #tpu.pipeline_mode<synchronous>, transform_indices = @transform_1, window_bounds = array<i64: 784, 20>}, {pipeline_mode = #tpu.pipeline_mode<synchronous>, transform_indices = @transform_2, window_bounds = array<i64: 1, 20>}, {pipeline_mode = #tpu.pipeline_mode<synchronous>, transform_indices = @transform_3, window_bounds = array<i64: 20, 20>}, {pipeline_mode = #tpu.pipeline_mode<synchronous>, transform_indices = @transform_4, window_bounds = array<i64: 1, 20>}, {pipeline_mode = #tpu.pipeline_mode<synchronous>, transform_indices = @transform_5, window_bounds = array<i64: 20, 10>}, {pipeline_mode = #tpu.pipeline_mode<synchronous>, transform_indices = @transform_6, window_bounds = array<i64: 1, 10>}, {transform_indices = @transform_7, window_bounds = array<i64: 8, 10>}]} {
    %c0 = arith.constant 0 : index
    %c0_0 = arith.constant 0 : index
    %0 = vector.load %arg1[%c0, %c0_0] : memref<8x784xf32, #tpu.memory_space<vmem>>, vector<8x784xf32>
    %1 = arith.truncf %0 : vector<8x784xf32> to vector<8x784xbf16>
    %c0_1 = arith.constant 0 : index
    %c0_2 = arith.constant 0 : index
    %2 = vector.load %arg2[%c0_1, %c0_2] : memref<784x20xbf16, #tpu.memory_space<vmem>>, vector<784x20xbf16>
    %cst = arith.constant dense<0.000000e+00> : vector<8x20xf32>
    %3 = tpu.matmul %1, %2, %cst {dimension_numbers = #tpu.dot_dimension_numbers<[1], [0], [0], [1], [0, 0, 1, 1], [], []>} : vector<8x784xbf16>, vector<784x20xbf16>, vector<8x20xf32> -> vector<8x20xf32>
    %c0_3 = arith.constant 0 : index
    %c0_4 = arith.constant 0 : index
    %4 = vector.load %arg3[%c0_3, %c0_4] : memref<1x20xf32, #tpu.memory_space<vmem>>, vector<1x20xf32>
    %5 = vector.broadcast %4 : vector<1x20xf32> to vector<8x20xf32>
    %6 = arith.addf %3, %5 : vector<8x20xf32>
    %cst_5 = arith.constant 0.000000e+00 : f32
    %7 = vector.broadcast %cst_5 : f32 to vector<8x20xf32>
    %8 = arith.maximumf %6, %7 : vector<8x20xf32>
    %9 = arith.truncf %8 : vector<8x20xf32> to vector<8x20xbf16>
    %c0_6 = arith.constant 0 : index
    %c0_7 = arith.constant 0 : index
    %10 = vector.load %arg4[%c0_6, %c0_7] : memref<20x20xbf16, #tpu.memory_space<vmem>>, vector<20x20xbf16>
    %cst_8 = arith.constant dense<0.000000e+00> : vector<8x20xf32>
    %11 = tpu.matmul %9, %10, %cst_8 {dimension_numbers = #tpu.dot_dimension_numbers<[1], [0], [0], [1], [0, 0, 1, 1], [], []>} : vector<8x20xbf16>, vector<20x20xbf16>, vector<8x20xf32> -> vector<8x20xf32>
    %c0_9 = arith.constant 0 : index
    %c0_10 = arith.constant 0 : index
    %12 = vector.load %arg5[%c0_9, %c0_10] : memref<1x20xf32, #tpu.memory_space<vmem>>, vector<1x20xf32>
    %13 = vector.broadcast %12 : vector<1x20xf32> to vector<8x20xf32>
    %14 = arith.addf %11, %13 : vector<8x20xf32>
    %cst_11 = arith.constant 0.000000e+00 : f32
    %15 = vector.broadcast %cst_11 : f32 to vector<8x20xf32>
    %16 = arith.maximumf %14, %15 : vector<8x20xf32>
    %17 = arith.truncf %16 : vector<8x20xf32> to vector<8x20xbf16>
    %c0_12 = arith.constant 0 : index
    %c0_13 = arith.constant 0 : index
    %18 = vector.load %arg6[%c0_12, %c0_13] : memref<20x10xbf16, #tpu.memory_space<vmem>>, vector<20x10xbf16>
    %cst_14 = arith.constant dense<0.000000e+00> : vector<8x10xf32>
    %19 = tpu.matmul %17, %18, %cst_14 {dimension_numbers = #tpu.dot_dimension_numbers<[1], [0], [0], [1], [0, 0, 1, 1], [], []>} : vector<8x20xbf16>, vector<20x10xbf16>, vector<8x10xf32> -> vector<8x10xf32>
    %c0_15 = arith.constant 0 : index
    %c0_16 = arith.constant 0 : index
    %20 = vector.load %arg7[%c0_15, %c0_16] : memref<1x10xf32, #tpu.memory_space<vmem>>, vector<1x10xf32>
    %21 = vector.broadcast %20 : vector<1x10xf32> to vector<8x10xf32>
    %22 = arith.addf %19, %21 : vector<8x10xf32>
    %c0_17 = arith.constant 0 : index
    %c0_18 = arith.constant 0 : index
    %23 = vector.load %arg8[%c0_17, %c0_18] : memref<8x10xf32, #tpu.memory_space<vmem>>, vector<8x10xf32>
    tpu.vector_store %arg8[%c0_17, %c0_18], %22 {strides = array<i32>} : memref<8x10xf32, #tpu.memory_space<vmem>>, vector<8x10xf32>,
    return
  }
  func.func @transform_0(%arg0: i32) -> (i32, i32) {
    %c0_i32 = arith.constant 0 : i32
    %c0_i32_0 = arith.constant 0 : i32
    return %arg0, %c0_i32 : i32, i32
  }
  func.func @transform_1(%arg0: i32) -> (i32, i32) {
    %c0_i32 = arith.constant 0 : i32
    %c0_i32_0 = arith.constant 0 : i32
    %c0_i32_1 = arith.constant 0 : i32
    return %c0_i32, %c0_i32_0 : i32, i32
  }
  func.func @transform_2(%arg0: i32) -> (i32, i32) {
    %c0_i32 = arith.constant 0 : i32
    %c0_i32_0 = arith.constant 0 : i32
    %c0_i32_1 = arith.constant 0 : i32
    return %c0_i32, %c0_i32_0 : i32, i32
  }
  func.func @transform_3(%arg0: i32) -> (i32, i32) {
    %c0_i32 = arith.constant 0 : i32
    %c0_i32_0 = arith.constant 0 : i32
    %c0_i32_1 = arith.constant 0 : i32
    return %c0_i32, %c0_i32_0 : i32, i32
  }
  func.func @transform_4(%arg0: i32) -> (i32, i32) {
    %c0_i32 = arith.constant 0 : i32
    %c0_i32_0 = arith.constant 0 : i32
    %c0_i32_1 = arith.constant 0 : i32
    return %c0_i32, %c0_i32_0 : i32, i32
  }
  func.func @transform_5(%arg0: i32) -> (i32, i32) {
    %c0_i32 = arith.constant 0 : i32
    %c0_i32_0 = arith.constant 0 : i32
    %c0_i32_1 = arith.constant 0 : i32
    return %c0_i32, %c0_i32_0 : i32, i32
  }
  func.func @transform_6(%arg0: i32) -> (i32, i32) {
    %c0_i32 = arith.constant 0 : i32
    %c0_i32_0 = arith.constant 0 : i32
    %c0_i32_1 = arith.constant 0 : i32
    return %c0_i32, %c0_i32_0 : i32, i32
  }
  func.func @transform_7(%arg0: i32) -> (i32, i32) {
    %c0_i32 = arith.constant 0 : i32
    %c0_i32_0 = arith.constant 0 : i32
    return %arg0, %c0_i32 : i32, i32
  }
}

</mosaic_0001>

<llo_original>
// kernel: tpu_custom_call.1
$region0: #{tpu_custom_call.1}
  #allocation0 [shape = 'u32[]', space=smem, size = 0x4, offset = 0x4, fixed_abs, tag = 'smem constant byte address 0x4 - core index']
  #allocation1 [shape = 'u32[144,128]{1,0:T(1,128)}', space=vmem, size = 0x12000, scoped, tag = 'internal scratch']
  %s0 = inlined_call_operand.vmem [shape: f32[4,784], index: 0, kind: input, shape index: {}]
  %s1 = inlined_call_operand.vmem [shape: bf16[784,20], index: 1, kind: input, shape index: {}]
  %s2 = inlined_call_operand.vmem [shape: f32[1,20], index: 2, kind: input, shape index: {}]
  %s3 = inlined_call_operand.vmem [shape: bf16[20,20], index: 3, kind: input, shape index: {}]
  %s4 = inlined_call_operand.vmem [shape: f32[1,20], index: 4, kind: input, shape index: {}]
  %s5 = inlined_call_operand.vmem [shape: bf16[20,10], index: 5, kind: input, shape index: {}]
  %s6 = inlined_call_operand.vmem [shape: f32[1,10], index: 6, kind: input, shape index: {}]
  %s7 = inlined_call_operand.hbm [shape: f32[4,10], index: 7, kind: output, shape index: {}]
  %s8 = sld [smem:[#allocation0]]
  $region38: #{tpu_custom_call.1} parent=0
    _
  %s10 = ssub.s32 1, %s8
  %s11 = scalar_select 0, %s10, %s8
  $region1: #{tpu_custom_call.1} parent=0
    #allocation2 [shape = 'u8[4096]{0}', space=vmem, size = 0x1000, scoped, tag = 'output window, operand 0, single buffered']
    #allocation3 [shape = 's32[1]{0}', space=sflag, size = 0x4, scoped, tag = 'scoped memory for tpu_custom_call.1']
    %12 = vsyncpa [#allocation3], 0
    // Predicated region
    $region2: #{tpu_custom_call.1} parent=1 // pred_check
      _
    $region3: #{tpu_custom_call.1} parent=1 // pred_check_branch
      %14 = sbr.rel (0) target = $region5
    $region4: #{tpu_custom_call.1} parent=1 // pred_region
      _
    $region5: #{tpu_custom_call.1} parent=1 // pred_fallthru
      _
    // Predicated region
    $region6: #{tpu_custom_call.1} parent=1 // pred_check
      _
    $region7: #{tpu_custom_call.1} parent=1 // pred_check_branch
      %16 = sbr.rel (0) target = $region9
    $region8: #{tpu_custom_call.1} parent=1 // pred_region
      _
    $region9: #{tpu_custom_call.1} parent=1 // pred_fallthru
      _
    // Predicated region
    $region10: #{tpu_custom_call.1} parent=1 // pred_check
      _
    $region11: #{tpu_custom_call.1} parent=1 // pred_check_branch
      %18 = sbr.rel (0) target = $region13
    $region12: #{tpu_custom_call.1} parent=1 // pred_region
      _
    $region13: #{tpu_custom_call.1} parent=1 // pred_fallthru
      _
    // Predicated region
    $region14: #{tpu_custom_call.1} parent=1 // pred_check
      _
    $region15: #{tpu_custom_call.1} parent=1 // pred_check_branch
      %20 = sbr.rel (0) target = $region17
    $region16: #{tpu_custom_call.1} parent=1 // pred_region
      _
    $region17: #{tpu_custom_call.1} parent=1 // pred_fallthru
      _
    // Predicated region
    $region18: #{tpu_custom_call.1} parent=1 // pred_check
      _
    $region19: #{tpu_custom_call.1} parent=1 // pred_check_branch
      %22 = sbr.rel (0) target = $region21
    $region20: #{tpu_custom_call.1} parent=1 // pred_region
      _
    $region21: #{tpu_custom_call.1} parent=1 // pred_fallthru
      _
    // Predicated region
    $region22: #{tpu_custom_call.1} parent=1 // pred_check
      _
    $region23: #{tpu_custom_call.1} parent=1 // pred_check_branch
      %24 = sbr.rel (0) target = $region25
    $region24: #{tpu_custom_call.1} parent=1 // pred_region
      _
    $region25: #{tpu_custom_call.1} parent=1 // pred_fallthru
      _
    // Predicated region
    $region26: #{tpu_custom_call.1} parent=1 // pred_check
      _
    $region27: #{tpu_custom_call.1} parent=1 // pred_check_branch
      %26 = sbr.rel (0) target = $region29
    $region28: #{tpu_custom_call.1} parent=1 // pred_region
      _
    $region29: #{tpu_custom_call.1} parent=1 // pred_fallthru
      _
    %v28 = vld [vmem:[%s0] sm:$0xff]
    %v29 = vld [vmem:[%s0 + $0x8] sm:$0xff]
    %v30 = vld [vmem:[%s0 + $0x10] sm:$0xff]
    %v31 = vld [vmem:[%s0 + $0x18] sm:$0xf]
    %v32 = vld [vmem:[%s0 + $0x1c] sm:$0xff]
    %v33 = vld [vmem:[%s0 + $0x24] sm:$0xff]
    %v34 = vld [vmem:[%s0 + $0x2c] sm:$0xff]
    %v35 = vld [vmem:[%s0 + $0x34] sm:$0xf]
    %v44 = vcombine.low %v28, %v32
    %v45 = vcombine.high %v28, %v32
    %v46 = vcombine.low %v29, %v33
    %v47 = vcombine.high %v29, %v33
    %v48 = vcombine.low %v30, %v34
    %v49 = vcombine.high %v30, %v34
    %v50 = vcombine.low %v31, %v35
    %v58 = vpack.c.bf16 %v44, %v44
    %v59 = vpack.c.bf16 %v45, %v45
    %v60 = vpack.c.bf16 %v46, %v46
    %v61 = vpack.c.bf16 %v47, %v47
    %v62 = vpack.c.bf16 %v48, %v48
    %v63 = vpack.c.bf16 %v49, %v49
    %v64 = vpack.c.bf16 %v50, %v50
    %v65 = vld [vmem:[%s1] sm:$0xf]
    %v66 = vld [vmem:[%s1 + $0x4] sm:$0xf]
    %v67 = vld [vmem:[%s1 + $0x8] sm:$0xf]
    %v68 = vld [vmem:[%s1 + $0xc] sm:$0xf]
    %v69 = vld [vmem:[%s1 + $0x10] sm:$0xf]
    %v70 = vld [vmem:[%s1 + $0x14] sm:$0xf]
    %v71 = vld [vmem:[%s1 + $0x18] sm:$0xf]
    %v72 = vld [vmem:[%s1 + $0x1c] sm:$0xf]
    %v73 = vld [vmem:[%s1 + $0x20] sm:$0xf]
    %v74 = vld [vmem:[%s1 + $0x24] sm:$0xf]
    %v75 = vld [vmem:[%s1 + $0x28] sm:$0xf]
    %v76 = vld [vmem:[%s1 + $0x2c] sm:$0xf]
    %v77 = vld [vmem:[%s1 + $0x30] sm:$0xf]
    %v78 = vld [vmem:[%s1 + $0x34] sm:$0xf]
    %v79 = vld [vmem:[%s1 + $0x38] sm:$0xf]
    %v80 = vld [vmem:[%s1 + $0x3c] sm:$0xf]
    %v81 = vld [vmem:[%s1 + $0x40] sm:$0xf]
    %v82 = vld [vmem:[%s1 + $0x44] sm:$0xf]
    %v83 = vld [vmem:[%s1 + $0x48] sm:$0xf]
    %v84 = vld [vmem:[%s1 + $0x4c] sm:$0xf]
    %v85 = vld [vmem:[%s1 + $0x50] sm:$0xf]
    %v86 = vld [vmem:[%s1 + $0x54] sm:$0xf]
    %v87 = vld [vmem:[%s1 + $0x58] sm:$0xf]
    %v88 = vld [vmem:[%s1 + $0x5c] sm:$0xf]
    %v89 = vld [vmem:[%s1 + $0x60] sm:$0xf]
    %v90 = vld [vmem:[%s1 + $0x64] sm:$0xf]
    %v91 = vld [vmem:[%s1 + $0x68] sm:$0xf]
    %v92 = vld [vmem:[%s1 + $0x6c] sm:$0xf]
    %v93 = vld [vmem:[%s1 + $0x70] sm:$0xf]
    %v94 = vld [vmem:[%s1 + $0x74] sm:$0xf]
    %v95 = vld [vmem:[%s1 + $0x78] sm:$0xf]
    %v96 = vld [vmem:[%s1 + $0x7c] sm:$0xf]
    %v97 = vld [vmem:[%s1 + $0x80] sm:$0xf]
    %v98 = vld [vmem:[%s1 + $0x84] sm:$0xf]
    %v99 = vld [vmem:[%s1 + $0x88] sm:$0xf]
    %v100 = vld [vmem:[%s1 + $0x8c] sm:$0xf]
    %v101 = vld [vmem:[%s1 + $0x90] sm:$0xf]
    %v102 = vld [vmem:[%s1 + $0x94] sm:$0xf]
    %v103 = vld [vmem:[%s1 + $0x98] sm:$0xf]
    %v104 = vld [vmem:[%s1 + $0x9c] sm:$0xf]
    %v105 = vld [vmem:[%s1 + $0xa0] sm:$0xf]
    %v106 = vld [vmem:[%s1 + $0xa4] sm:$0xf]
    %v107 = vld [vmem:[%s1 + $0xa8] sm:$0xf]
    %v108 = vld [vmem:[%s1 + $0xac] sm:$0xf]
    %v109 = vld [vmem:[%s1 + $0xb0] sm:$0xf]
    %v110 = vld [vmem:[%s1 + $0xb4] sm:$0xf]
    %v111 = vld [vmem:[%s1 + $0xb8] sm:$0xf]
    %v112 = vld [vmem:[%s1 + $0xbc] sm:$0xf]
    %v113 = vld [vmem:[%s1 + $0xc0] sm:$0xf]
    %v114 = vld [vmem:[%s1 + $0xc4] sm:$0xf]
    %v115 = vld [vmem:[%s1 + $0xc8] sm:$0xf]
    %v116 = vld [vmem:[%s1 + $0xcc] sm:$0xf]
    %v117 = vld [vmem:[%s1 + $0xd0] sm:$0xf]
    %v118 = vld [vmem:[%s1 + $0xd4] sm:$0xf]
    %v119 = vld [vmem:[%s1 + $0xd8] sm:$0xf]
    %v120 = vld [vmem:[%s1 + $0xdc] sm:$0xf]
    %v121 = vld [vmem:[%s1 + $0xe0] sm:$0xf]
    %v122 = vld [vmem:[%s1 + $0xe4] sm:$0xf]
    %v123 = vld [vmem:[%s1 + $0xe8] sm:$0xf]
    %v124 = vld [vmem:[%s1 + $0xec] sm:$0xf]
    %v125 = vld [vmem:[%s1 + $0xf0] sm:$0xf]
    %v126 = vld [vmem:[%s1 + $0xf4] sm:$0xf]
    %v127 = vld [vmem:[%s1 + $0xf8] sm:$0xf]
    %v128 = vld [vmem:[%s1 + $0xfc] sm:$0xf]
    %v129 = vld [vmem:[%s1 + $0x100] sm:$0xf]
    %v130 = vld [vmem:[%s1 + $0x104] sm:$0xf]
    %v131 = vld [vmem:[%s1 + $0x108] sm:$0xf]
    %v132 = vld [vmem:[%s1 + $0x10c] sm:$0xf]
    %v133 = vld [vmem:[%s1 + $0x110] sm:$0xf]
    %v134 = vld [vmem:[%s1 + $0x114] sm:$0xf]
    %v135 = vld [vmem:[%s1 + $0x118] sm:$0xf]
    %v136 = vld [vmem:[%s1 + $0x11c] sm:$0xf]
    %v137 = vld [vmem:[%s1 + $0x120] sm:$0xf]
    %v138 = vld [vmem:[%s1 + $0x124] sm:$0xf]
    %v139 = vld [vmem:[%s1 + $0x128] sm:$0xf]
    %v140 = vld [vmem:[%s1 + $0x12c] sm:$0xf]
    %v141 = vld [vmem:[%s1 + $0x130] sm:$0xf]
    %v142 = vld [vmem:[%s1 + $0x134] sm:$0xf]
    %v143 = vld [vmem:[%s1 + $0x138] sm:$0xf]
    %v144 = vld [vmem:[%s1 + $0x13c] sm:$0xf]
    %v145 = vld [vmem:[%s1 + $0x140] sm:$0xf]
    %v146 = vld [vmem:[%s1 + $0x144] sm:$0xf]
    %v147 = vld [vmem:[%s1 + $0x148] sm:$0xf]
    %v148 = vld [vmem:[%s1 + $0x14c] sm:$0xf]
    %v149 = vld [vmem:[%s1 + $0x150] sm:$0xf]
    %v150 = vld [vmem:[%s1 + $0x154] sm:$0xf]
    %v151 = vld [vmem:[%s1 + $0x158] sm:$0xf]
    %v152 = vld [vmem:[%s1 + $0x15c] sm:$0xf]
    %v153 = vld [vmem:[%s1 + $0x160] sm:$0xf]
    %v154 = vld [vmem:[%s1 + $0x164] sm:$0xf]
    %v155 = vld [vmem:[%s1 + $0x168] sm:$0xf]
    %v156 = vld [vmem:[%s1 + $0x16c] sm:$0xf]
    %v157 = vld [vmem:[%s1 + $0x170] sm:$0xf]
    %v158 = vld [vmem:[%s1 + $0x174] sm:$0xf]
    %v159 = vld [vmem:[%s1 + $0x178] sm:$0xf]
    %v160 = vld [vmem:[%s1 + $0x17c] sm:$0xf]
    %v161 = vld [vmem:[%s1 + $0x180] sm:$0xf]
    %v162 = vld [vmem:[%s1 + $0x184] sm:$0xf]
    %v163 = vld [vmem:[%s2] sm:$0x1]
    %v165 = vlaneseq
    %v166 = vshrl.u32 %v165, 7
    %v167 = vsub.s32 0, %v166
    %v168 = vrot.slane %v163, %v167
    %v268 = vunpack.c.l.b16 %v65
    %v269 = vunpack.c.l.b16 %v66
    %v270 = vunpack.c.l.b16 %v67
    %v271 = vunpack.c.l.b16 %v68
    %v272 = vunpack.c.l.b16 %v69
    %v273 = vunpack.c.l.b16 %v70
    %v274 = vunpack.c.l.b16 %v71
    %v275 = vunpack.c.l.b16 %v72
    %v276 = vunpack.c.l.b16 %v73
    %v277 = vunpack.c.l.b16 %v74
    %v278 = vunpack.c.l.b16 %v75
    %v279 = vunpack.c.l.b16 %v76
    %v280 = vunpack.c.l.b16 %v77
    %v281 = vunpack.c.l.b16 %v78
    %v282 = vunpack.c.l.b16 %v79
    %v283 = vunpack.c.l.b16 %v80
    %v284 = vunpack.c.l.b16 %v81
    %v285 = vunpack.c.l.b16 %v82
    %v286 = vunpack.c.l.b16 %v83
    %v287 = vunpack.c.l.b16 %v84
    %v288 = vunpack.c.l.b16 %v85
    %v289 = vunpack.c.l.b16 %v86
    %v290 = vunpack.c.l.b16 %v87
    %v291 = vunpack.c.l.b16 %v88
    %v292 = vunpack.c.l.b16 %v89
    %v293 = vunpack.c.l.b16 %v90
    %v294 = vunpack.c.l.b16 %v91
    %v295 = vunpack.c.l.b16 %v92
    %v296 = vunpack.c.l.b16 %v93
    %v297 = vunpack.c.l.b16 %v94
    %v298 = vunpack.c.l.b16 %v95
    %v299 = vunpack.c.l.b16 %v96
    %v300 = vunpack.c.l.b16 %v97
    %v301 = vunpack.c.l.b16 %v98
    %v302 = vunpack.c.l.b16 %v99
    %v303 = vunpack.c.l.b16 %v100
    %v304 = vunpack.c.l.b16 %v101
    %v305 = vunpack.c.l.b16 %v102
    %v306 = vunpack.c.l.b16 %v103
    %v307 = vunpack.c.l.b16 %v104
    %v308 = vunpack.c.l.b16 %v105
    %v309 = vunpack.c.l.b16 %v106
    %v310 = vunpack.c.l.b16 %v107
    %v311 = vunpack.c.l.b16 %v108
    %v312 = vunpack.c.l.b16 %v109
    %v313 = vunpack.c.l.b16 %v110
    %v314 = vunpack.c.l.b16 %v111
    %v315 = vunpack.c.l.b16 %v112
    %v316 = vunpack.c.l.b16 %v113
    %v317 = vunpack.c.l.b16 %v114
    %v318 = vunpack.c.l.b16 %v115
    %v319 = vunpack.c.l.b16 %v116
    %v320 = vunpack.c.l.b16 %v117
    %v321 = vunpack.c.l.b16 %v118
    %v322 = vunpack.c.l.b16 %v119
    %v323 = vunpack.c.l.b16 %v120
    %v324 = vunpack.c.l.b16 %v121
    %v325 = vunpack.c.l.b16 %v122
    %v326 = vunpack.c.l.b16 %v123
    %v327 = vunpack.c.l.b16 %v124
    %v328 = vunpack.c.l.b16 %v125
    %v329 = vunpack.c.l.b16 %v126
    %v330 = vunpack.c.l.b16 %v127
    %v331 = vunpack.c.l.b16 %v128
    %v332 = vunpack.c.l.b16 %v129
    %v333 = vunpack.c.l.b16 %v130
    %v334 = vunpack.c.l.b16 %v131
    %v335 = vunpack.c.l.b16 %v132
    %v336 = vunpack.c.l.b16 %v133
    %v337 = vunpack.c.l.b16 %v134
    %v338 = vunpack.c.l.b16 %v135
    %v339 = vunpack.c.l.b16 %v136
    %v340 = vunpack.c.l.b16 %v137
    %v341 = vunpack.c.l.b16 %v138
    %v342 = vunpack.c.l.b16 %v139
    %v343 = vunpack.c.l.b16 %v140
    %v344 = vunpack.c.l.b16 %v141
    %v345 = vunpack.c.l.b16 %v142
    %v346 = vunpack.c.l.b16 %v143
    %v347 = vunpack.c.l.b16 %v144
    %v348 = vunpack.c.l.b16 %v145
    %v349 = vunpack.c.l.b16 %v146
    %v350 = vunpack.c.l.b16 %v147
    %v351 = vunpack.c.l.b16 %v148
    %v352 = vunpack.c.l.b16 %v149
    %v353 = vunpack.c.l.b16 %v150
    %v354 = vunpack.c.l.b16 %v151
    %v355 = vunpack.c.l.b16 %v152
    %v356 = vunpack.c.l.b16 %v153
    %v357 = vunpack.c.l.b16 %v154
    %v358 = vunpack.c.l.b16 %v155
    %v359 = vunpack.c.l.b16 %v156
    %v360 = vunpack.c.l.b16 %v157
    %v361 = vunpack.c.l.b16 %v158
    %v362 = vunpack.c.l.b16 %v159
    %v363 = vunpack.c.l.b16 %v160
    %v364 = vunpack.c.l.b16 %v161
    %v365 = vunpack.c.l.b16 %v162
    %v366 = vpack.c.b16 %v269, %v268
    %v367 = vpack.c.b16 %v271, %v270
    %v368 = vpack.c.b16 %v273, %v272
    %v369 = vpack.c.b16 %v275, %v274
    %v370 = vpack.c.b16 %v277, %v276
    %v371 = vpack.c.b16 %v279, %v278
    %v372 = vpack.c.b16 %v281, %v280
    %v373 = vpack.c.b16 %v283, %v282
    %v374 = vpack.c.b16 %v285, %v284
    %v375 = vpack.c.b16 %v287, %v286
    %v376 = vpack.c.b16 %v289, %v288
    %v377 = vpack.c.b16 %v291, %v290
    %v378 = vpack.c.b16 %v293, %v292
    %v379 = vpack.c.b16 %v295, %v294
    %v380 = vpack.c.b16 %v297, %v296
    %v381 = vpack.c.b16 %v299, %v298
    %v382 = vpack.c.b16 %v301, %v300
    %v383 = vpack.c.b16 %v303, %v302
    %v384 = vpack.c.b16 %v305, %v304
    %v385 = vpack.c.b16 %v307, %v306
    %v386 = vpack.c.b16 %v309, %v308
    %v387 = vpack.c.b16 %v311, %v310
    %v388 = vpack.c.b16 %v313, %v312
    %v389 = vpack.c.b16 %v315, %v314
    %v390 = vpack.c.b16 %v317, %v316
    %v391 = vpack.c.b16 %v319, %v318
    %v392 = vpack.c.b16 %v321, %v320
    %v393 = vpack.c.b16 %v323, %v322
    %v394 = vpack.c.b16 %v325, %v324
    %v395 = vpack.c.b16 %v327, %v326
    %v396 = vpack.c.b16 %v329, %v328
    %v397 = vpack.c.b16 %v331, %v330
    %v398 = vpack.c.b16 %v333, %v332
    %v399 = vpack.c.b16 %v335, %v334
    %v400 = vpack.c.b16 %v337, %v336
    %v401 = vpack.c.b16 %v339, %v338
    %v402 = vpack.c.b16 %v341, %v340
    %v403 = vpack.c.b16 %v343, %v342
    %v404 = vpack.c.b16 %v345, %v344
    %v405 = vpack.c.b16 %v347, %v346
    %v406 = vpack.c.b16 %v349, %v348
    %v407 = vpack.c.b16 %v351, %v350
    %v408 = vpack.c.b16 %v353, %v352
    %v409 = vpack.c.b16 %v355, %v354
    %v410 = vpack.c.b16 %v357, %v356
    %v411 = vpack.c.b16 %v359, %v358
    %v412 = vpack.c.b16 %v361, %v360
    %v413 = vpack.c.b16 %v363, %v362
    %v414 = vpack.c.b16 %v365, %v364
    %vm464 = vcmask 130048
    %v466 = vsel %vm464, %v64, 0
    %468 = vmatprep.subr.bf16.mxu0 0
    %469 = vmatpush1.bf16.msra.mxu0 %v366
    %470 = vmatprep.subr.bf16.mxu0 0
    %471 = vmatpush1.bf16.msra.mxu0 %v367
    %472 = vmatprep.subr.bf16.mxu0 0
    %473 = vmatpush1.bf16.msra.mxu0 %v368
    %474 = vmatprep.subr.bf16.mxu0 0
    %475 = vmatpush1.bf16.msra.mxu0 %v369
    %476 = vmatprep.subr.bf16.mxu0 0
    %477 = vmatpush1.bf16.msra.mxu0 %v370
    %478 = vmatprep.subr.bf16.mxu0 0
    %479 = vmatpush1.bf16.msra.mxu0 %v371
    %480 = vmatprep.subr.bf16.mxu0 0
    %481 = vmatpush1.bf16.msra.mxu0 %v372
    %482 = vmatprep.subr.bf16.mxu0 0
    %483 = vmatpush1.bf16.msra.mxu0 %v373
    %484 = vmatprep.subr.bf16.mxu0 0
    %485 = vmatpush1.bf16.msra.mxu0 %v374
    %486 = vmatprep.subr.bf16.mxu0 0
    %487 = vmatpush1.bf16.msra.mxu0 %v375
    %488 = vmatprep.subr.bf16.mxu0 0
    %489 = vmatpush1.bf16.msra.mxu0 %v376
    %490 = vmatprep.subr.bf16.mxu0 0
    %491 = vmatpush1.bf16.msra.mxu0 %v377
    %492 = vmatprep.subr.bf16.mxu0 0
    %493 = vmatpush1.bf16.msra.mxu0 %v378
    %494 = vmatprep.subr.bf16.mxu0 0
    %495 = vmatpush1.bf16.msra.mxu0 %v379
    %496 = vmatprep.subr.bf16.mxu0 0
    %497 = vmatpush1.bf16.msra.mxu0 %v380
    %498 = vmatprep.subr.bf16.mxu0 0
    %499 = vmatpush1.bf16.msra.mxu0 %v381
    %500 = vmatprep.mubr.bf16.mxu0 %v59
    %501 = vmatmul.mubr.bf16.gmra.mrb[0].mxu0 %v58
    %v502 = vpop.f32.mrb[0].mxu0
    %v503 = vadd.f32 %v168, %v502
    %v504 = vpop.f32.mrb[0].mxu0
    %v505 = vpop.f32.mrb[0].mxu0
    %v506 = vpop.f32.mrb[0].mxu0
    %507 = vdwg.mxu0
    %508 = vmatprep.subr.bf16.mxu0 0
    %509 = vmatpush1.bf16.msra.mxu0 %v382
    %510 = vmatprep.subr.bf16.mxu0 0
    %511 = vmatpush1.bf16.msra.mxu0 %v383
    %512 = vmatprep.subr.bf16.mxu0 0
    %513 = vmatpush1.bf16.msra.mxu0 %v384
    %514 = vmatprep.subr.bf16.mxu0 0
    %515 = vmatpush1.bf16.msra.mxu0 %v385
    %516 = vmatprep.subr.bf16.mxu0 0
    %517 = vmatpush1.bf16.msra.mxu0 %v386
    %518 = vmatprep.subr.bf16.mxu0 0
    %519 = vmatpush1.bf16.msra.mxu0 %v387
    %520 = vmatprep.subr.bf16.mxu0 0
    %521 = vmatpush1.bf16.msra.mxu0 %v388
    %522 = vmatprep.subr.bf16.mxu0 0
    %523 = vmatpush1.bf16.msra.mxu0 %v389
    %524 = vmatprep.subr.bf16.mxu0 0
    %525 = vmatpush1.bf16.msra.mxu0 %v390
    %526 = vmatprep.subr.bf16.mxu0 0
    %527 = vmatpush1.bf16.msra.mxu0 %v391
    %528 = vmatprep.subr.bf16.mxu0 0
    %529 = vmatpush1.bf16.msra.mxu0 %v392
    %530 = vmatprep.subr.bf16.mxu0 0
    %531 = vmatpush1.bf16.msra.mxu0 %v393
    %532 = vmatprep.subr.bf16.mxu0 0
    %533 = vmatpush1.bf16.msra.mxu0 %v394
    %534 = vmatprep.subr.bf16.mxu0 0
    %535 = vmatpush1.bf16.msra.mxu0 %v395
    %536 = vmatprep.subr.bf16.mxu0 0
    %537 = vmatpush1.bf16.msra.mxu0 %v396
    %538 = vmatprep.subr.bf16.mxu0 0
    %539 = vmatpush1.bf16.msra.mxu0 %v397
    %540 = vmatprep.mubr.bf16.mxu0 %v61
    %541 = vmatmul.mubr.bf16.gmra.mrb[0].mxu0 %v60
    %v542 = vpop.f32.mrb[0].mxu0
    %v543 = vadd.f32 %v503, %v542
    %v544 = vpop.f32.mrb[0].mxu0
    %v545 = vpop.f32.mrb[0].mxu0
    %v546 = vpop.f32.mrb[0].mxu0
    %547 = vdwg.mxu0
    %548 = vmatprep.subr.bf16.mxu0 0
    %549 = vmatpush1.bf16.msra.mxu0 %v398
    %550 = vmatprep.subr.bf16.mxu0 0
    %551 = vmatpush1.bf16.msra.mxu0 %v399
    %552 = vmatprep.subr.bf16.mxu0 0
    %553 = vmatpush1.bf16.msra.mxu0 %v400
    %554 = vmatprep.subr.bf16.mxu0 0
    %555 = vmatpush1.bf16.msra.mxu0 %v401
    %556 = vmatprep.subr.bf16.mxu0 0
    %557 = vmatpush1.bf16.msra.mxu0 %v402
    %558 = vmatprep.subr.bf16.mxu0 0
    %559 = vmatpush1.bf16.msra.mxu0 %v403
    %560 = vmatprep.subr.bf16.mxu0 0
    %561 = vmatpush1.bf16.msra.mxu0 %v404
    %562 = vmatprep.subr.bf16.mxu0 0
    %563 = vmatpush1.bf16.msra.mxu0 %v405
    %564 = vmatprep.subr.bf16.mxu0 0
    %565 = vmatpush1.bf16.msra.mxu0 %v406
    %566 = vmatprep.subr.bf16.mxu0 0
    %567 = vmatpush1.bf16.msra.mxu0 %v407
    %568 = vmatprep.subr.bf16.mxu0 0
    %569 = vmatpush1.bf16.msra.mxu0 %v408
    %570 = vmatprep.subr.bf16.mxu0 0
    %571 = vmatpush1.bf16.msra.mxu0 %v409
    %572 = vmatprep.subr.bf16.mxu0 0
    %573 = vmatpush1.bf16.msra.mxu0 %v410
    %574 = vmatprep.subr.bf16.mxu0 0
    %575 = vmatpush1.bf16.msra.mxu0 %v411
    %576 = vmatprep.subr.bf16.mxu0 0
    %577 = vmatpush1.bf16.msra.mxu0 %v412
    %578 = vmatprep.subr.bf16.mxu0 0
    %579 = vmatpush1.bf16.msra.mxu0 %v413
    %580 = vmatprep.mubr.bf16.mxu0 %v63
    %581 = vmatmul.mubr.bf16.gmra.mrb[0].mxu0 %v62
    %v582 = vpop.f32.mrb[0].mxu0
    %v583 = vadd.f32 %v543, %v582
    %v584 = vpop.f32.mrb[0].mxu0
    %v585 = vpop.f32.mrb[0].mxu0
    %v586 = vpop.f32.mrb[0].mxu0
    %587 = vdwg.mxu0
    %588 = vmatprep.subr.bf16.mxu0 0
    %589 = vmatpush1.bf16.msra.mxu0 %v414
    %590 = vmatprep.subr.bf16.mxu0 0
    %591 = vmatpush1.bf16.msra.mxu0 0
    %592 = vmatprep.subr.bf16.mxu0 0
    %593 = vmatpush1.bf16.msra.mxu0 0
    %594 = vmatprep.subr.bf16.mxu0 0
    %595 = vmatpush1.bf16.msra.mxu0 0
    %596 = vmatprep.subr.bf16.mxu0 0
    %597 = vmatpush1.bf16.msra.mxu0 0
    %598 = vmatprep.subr.bf16.mxu0 0
    %599 = vmatpush1.bf16.msra.mxu0 0
    %600 = vmatprep.subr.bf16.mxu0 0
    %601 = vmatpush1.bf16.msra.mxu0 0
    %602 = vmatprep.subr.bf16.mxu0 0
    %603 = vmatpush1.bf16.msra.mxu0 0
    %604 = vmatprep.subr.bf16.mxu0 0
    %605 = vmatpush1.bf16.msra.mxu0 0
    %606 = vmatprep.subr.bf16.mxu0 0
    %607 = vmatpush1.bf16.msra.mxu0 0
    %608 = vmatprep.subr.bf16.mxu0 0
    %609 = vmatpush1.bf16.msra.mxu0 0
    %610 = vmatprep.subr.bf16.mxu0 0
    %611 = vmatpush1.bf16.msra.mxu0 0
    %612 = vmatprep.subr.bf16.mxu0 0
    %613 = vmatpush1.bf16.msra.mxu0 0
    %614 = vmatprep.subr.bf16.mxu0 0
    %615 = vmatpush1.bf16.msra.mxu0 0
    %616 = vmatprep.subr.bf16.mxu0 0
    %617 = vmatpush1.bf16.msra.mxu0 0
    %618 = vmatprep.subr.bf16.mxu0 0
    %619 = vmatpush1.bf16.msra.mxu0 0
    %620 = vmatprep.mubr.bf16.mxu0 0
    %621 = vmatmul.mubr.bf16.gmra.mrb[0].mxu0 %v466
    %v622 = vpop.f32.mrb[0].mxu0
    %v623 = vadd.f32 %v583, %v622
    %v624 = vpop.f32.mrb[0].mxu0
    %v625 = vpop.f32.mrb[0].mxu0
    %v626 = vpop.f32.mrb[0].mxu0
    %627 = vdwg.mxu0
    %v628 = vmax.f32 %v623, 0.0
    %v629 = vpack.c.bf16 %v628, %v628
    %v630 = vld [vmem:[%s3] sm:$0xf]
    %v631 = vld [vmem:[%s3 + $0x4] sm:$0xf]
    %v632 = vld [vmem:[%s3 + $0x8] sm:$0x3]
    %v633 = vld [vmem:[%s4] sm:$0x1]
    %v635 = vlaneseq
    %v636 = vshrl.u32 %v635, 7
    %v637 = vsub.s32 0, %v636
    %v638 = vrot.slane %v633, %v637
    %v643 = vunpack.c.l.b16 %v630
    %v644 = vunpack.c.l.b16 %v631
    %v645 = vunpack.c.l.b16 %v632
    %v646 = vpack.c.b16 %v644, %v643
    %v647 = vpack.c.b16 %v645, %v645
    %vm649 = vcmask 162816
    %v651 = vsel %vm649, %v629, 0
    %vm653 = vcmask 1041408
    %v655 = vsel %vm653, %v647, 0
    %657 = vmatprep.subr.bf16.mxu0 0
    %658 = vmatpush1.bf16.msra.mxu0 %v646
    %659 = vmatprep.subr.bf16.mxu0 0
    %660 = vmatpush1.bf16.msra.mxu0 %v655
    %661 = vmatprep.subr.bf16.mxu0 0
    %662 = vmatpush1.bf16.msra.mxu0 0
    %663 = vmatprep.subr.bf16.mxu0 0
    %664 = vmatpush1.bf16.msra.mxu0 0
    %665 = vmatprep.subr.bf16.mxu0 0
    %666 = vmatpush1.bf16.msra.mxu0 0
    %667 = vmatprep.subr.bf16.mxu0 0
    %668 = vmatpush1.bf16.msra.mxu0 0
    %669 = vmatprep.subr.bf16.mxu0 0
    %670 = vmatpush1.bf16.msra.mxu0 0
    %671 = vmatprep.subr.bf16.mxu0 0
    %672 = vmatpush1.bf16.msra.mxu0 0
    %673 = vmatprep.subr.bf16.mxu0 0
    %674 = vmatpush1.bf16.msra.mxu0 0
    %675 = vmatprep.subr.bf16.mxu0 0
    %676 = vmatpush1.bf16.msra.mxu0 0
    %677 = vmatprep.subr.bf16.mxu0 0
    %678 = vmatpush1.bf16.msra.mxu0 0
    %679 = vmatprep.subr.bf16.mxu0 0
    %680 = vmatpush1.bf16.msra.mxu0 0
    %681 = vmatprep.subr.bf16.mxu0 0
    %682 = vmatpush1.bf16.msra.mxu0 0
    %683 = vmatprep.subr.bf16.mxu0 0
    %684 = vmatpush1.bf16.msra.mxu0 0
    %685 = vmatprep.subr.bf16.mxu0 0
    %686 = vmatpush1.bf16.msra.mxu0 0
    %687 = vmatprep.subr.bf16.mxu0 0
    %688 = vmatpush1.bf16.msra.mxu0 0
    %689 = vmatprep.mubr.bf16.mxu0 0
    %690 = vmatmul.mubr.bf16.gmra.mrb[0].mxu0 %v651
    %v691 = vpop.f32.mrb[0].mxu0
    %v692 = vadd.f32 %v638, %v691
    %v693 = vpop.f32.mrb[0].mxu0
    %v694 = vpop.f32.mrb[0].mxu0
    %v695 = vpop.f32.mrb[0].mxu0
    %696 = vdwg.mxu0
    %v697 = vmax.f32 %v692, 0.0
    %v698 = vpack.c.bf16 %v697, %v697
    %v699 = vld [vmem:[%s5] sm:$0xf]
    %v700 = vld [vmem:[%s5 + $0x4] sm:$0xf]
    %v701 = vld [vmem:[%s5 + $0x8] sm:$0x3]
    %v702 = vld [vmem:[%s6] sm:$0x1]
    %v704 = vlaneseq
    %v705 = vshrl.u32 %v704, 7
    %v706 = vsub.s32 0, %v705
    %v707 = vrot.slane %v702, %v706
    %v712 = vunpack.c.l.b16 %v699
    %v713 = vunpack.c.l.b16 %v700
    %v714 = vunpack.c.l.b16 %v701
    %v715 = vpack.c.b16 %v713, %v712
    %v716 = vpack.c.b16 %v714, %v714
    %v719 = vsel %vm649, %v698, 0
    %v722 = vsel %vm653, %v716, 0
    %724 = vmatprep.subr.bf16.mxu0 0
    %725 = vmatpush1.bf16.msra.mxu0 %v715
    %726 = vmatprep.subr.bf16.mxu0 0
    %727 = vmatpush1.bf16.msra.mxu0 %v722
    %728 = vmatprep.subr.bf16.mxu0 0
    %729 = vmatpush1.bf16.msra.mxu0 0
    %730 = vmatprep.subr.bf16.mxu0 0
    %731 = vmatpush1.bf16.msra.mxu0 0
    %732 = vmatprep.subr.bf16.mxu0 0
    %733 = vmatpush1.bf16.msra.mxu0 0
    %734 = vmatprep.subr.bf16.mxu0 0
    %735 = vmatpush1.bf16.msra.mxu0 0
    %736 = vmatprep.subr.bf16.mxu0 0
    %737 = vmatpush1.bf16.msra.mxu0 0
    %738 = vmatprep.subr.bf16.mxu0 0
    %739 = vmatpush1.bf16.msra.mxu0 0
    %740 = vmatprep.subr.bf16.mxu0 0
    %741 = vmatpush1.bf16.msra.mxu0 0
    %742 = vmatprep.subr.bf16.mxu0 0
    %743 = vmatpush1.bf16.msra.mxu0 0
    %744 = vmatprep.subr.bf16.mxu0 0
    %745 = vmatpush1.bf16.msra.mxu0 0
    %746 = vmatprep.subr.bf16.mxu0 0
    %747 = vmatpush1.bf16.msra.mxu0 0
    %748 = vmatprep.subr.bf16.mxu0 0
    %749 = vmatpush1.bf16.msra.mxu0 0
    %750 = vmatprep.subr.bf16.mxu0 0
    %751 = vmatpush1.bf16.msra.mxu0 0
    %752 = vmatprep.subr.bf16.mxu0 0
    %753 = vmatpush1.bf16.msra.mxu0 0
    %754 = vmatprep.subr.bf16.mxu0 0
    %755 = vmatpush1.bf16.msra.mxu0 0
    %756 = vmatprep.mubr.bf16.mxu0 0
    %757 = vmatmul.mubr.bf16.gmra.mrb[0].mxu0 %v719
    %v758 = vpop.f32.mrb[0].mxu0
    %v759 = vadd.f32 %v707, %v758
    %v760 = vpop.f32.mrb[0].mxu0
    %v761 = vpop.f32.mrb[0].mxu0
    %v762 = vpop.f32.mrb[0].mxu0
    %763 = vdwg.mxu0
    %vm764 = vcmask 80896
    %765 = vst.msk [vmem:[#allocation2] sm:$0xff] %vm764, %v759
    // Predicated region
    $region30: #{tpu_custom_call.1} parent=1 // pred_check
      _
    $region31: #{tpu_custom_call.1} parent=1 // pred_check_branch
      %767 = sbr.rel (0) target = $region33
    $region32: #{tpu_custom_call.1} parent=1 // pred_region
      %s769 = ssub.s32 128, 64
      %770 = vsyncadd [#allocation3], %s769
      %s771 = sshll.u32 [#allocation2], 4
      %s772 = int_to_ptr.vmem [resolvable:$true] %s771
      %777 = dma.vmem_to_hbm [thread:$0]  %s772, 64, %s7, [#allocation3], 64, 64, 4
    $region33: #{tpu_custom_call.1} parent=1 // pred_fallthru
      _
    // Predicated region
    $region34: #{tpu_custom_call.1} parent=1 // pred_check
      _
    $region35: #{tpu_custom_call.1} parent=1 // pred_check_branch
      %779 = sbr.rel (0) target = $region37
    $region36: #{tpu_custom_call.1} parent=1 // pred_region
      %780 = dma.done [#allocation3], 128
    $region37: #{tpu_custom_call.1} parent=1 // pred_fallthru
      _
    %781 = vsyncpa [#allocation3], 1

</llo_original>
